<compile_context>
chip_gen: v7x
topology: tpu7x:2x2x1
jax: 0.10.0
libtpu: 0.0.40
codegen_flags: <defaults>
</compile_context>

<pallas_src>
import functools

import jax
import jax.numpy as jnp
from jax import lax
from jax.experimental import pallas as pl
from jax.experimental.pallas import tpu as pltpu

_HEAD_PAD = 128  # lane-dense width for the MLP head (fc1=64, fc2=32, fc3=1)


def _lstm_head_kernel(T, B, H,
                      x_ref, wih_ref, whh_ref, blstm_ref,
                      w1_ref, w2_ref, w3_ref, bhead_ref,
                      out_ref):
    G = 4 * H

    # --- batched, non-recurrent input projection for all time steps at once --
    #   (T*B, D)bf16 @ (D, 4H)bf16 -> f32, + pre-scaled combined LSTM bias.
    xw = (jnp.dot(x_ref[...], wih_ref[...], preferred_element_type=jnp.float32)
          + blstm_ref[...])

    whh = whh_ref[...]                    # (H, 4H) bf16, hoisted out of the loop

    # Lane constants for the fused activation: sigmoid(z) = 0.5*tanh(z/2)+0.5.
    # The /2 is already folded into the i/f/o gate columns of W_ih/W_hh/b in
    # prepare_params, so the loop does ONE tanh over (B, 4H) and an affine
    # correction of the i/f/o lanes (g lanes pass through the tanh unchanged).
    lane = lax.broadcasted_iota(jnp.int32, (1, G), 1)
    is_g = jnp.logical_and(lane >= 2 * H, lane < 3 * H)
    post_scale = jnp.where(is_g, 1.0, 0.5).astype(jnp.float32)
    post_bias = jnp.where(is_g, 0.0, 0.5).astype(jnp.float32)

    h = jnp.zeros((B, H), jnp.float32)
    c = jnp.zeros((B, H), jnp.float32)

    # --- fully unrolled recurrence; h/c live in vregs (loop-carried values) --
    for t in range(T):
        gates = xw[t * B:(t + 1) * B, :] + jnp.dot(
            h.astype(jnp.bfloat16), whh,
            preferred_element_type=jnp.float32)                  # (B, 4H) f32
        act = jnp.tanh(gates) * post_scale + post_bias           # one EUP pass
        i_g = act[:, 0 * H:1 * H]
        f_g = act[:, 1 * H:2 * H]
        g_g = act[:, 2 * H:3 * H]
        o_g = act[:, 3 * H:4 * H]
        c = f_g * c + i_g * g_g
        h = o_g * jnp.tanh(c)

    # --- fused MLP head (zero-padded to 128 lanes => lane-dense N / store) ---
    y = jnp.maximum(
        jnp.dot(h.astype(jnp.bfloat16), w1_ref[...],
                preferred_element_type=jnp.float32) + bhead_ref[0:1, :], 0.0)
    y = jnp.maximum(
        jnp.dot(y.astype(jnp.bfloat16), w2_ref[...],
                preferred_element_type=jnp.float32) + bhead_ref[1:2, :], 0.0)
    # fc3 (N=1): VPU multiply + cross-lane reduction instead of an N=1 MXU pass.
    y3 = jnp.sum(y * w3_ref[...], axis=-1, keepdims=True)          # (B, 1)
    # NOTE: all 128 lanes of out_ref hold y3+b3 (lane-dense unmasked store);
    # the wrapper slices [:, :1]. Do not consume the unsliced buffer directly.
    out_ref[...] = (y3 + bhead_ref[2:3, :]).astype(out_ref.dtype)


def prepare_params(params, hidden_size):
    """One-time (load-time) weight layout plumbing, off the per-call path:
    transposes, gate pre-scaling for the fused tanh activation, bf16 casts of
    the MXU operands, lane padding for the head, bias packing."""
    H = hidden_size
    G = 4 * H
    P = _HEAD_PAD

    # Pre-fold the /2 of sigmoid(z)=0.5*tanh(z/2)+0.5 into the i/f/o gate
    # columns (exact: multiplying by 0.5 only changes the fp exponent).
    gate_scale = jnp.concatenate([
        jnp.full((H,), 0.5, jnp.float32),
        jnp.full((H,), 0.5, jnp.float32),
        jnp.ones((H,), jnp.float32),
        jnp.full((H,), 0.5, jnp.float32)])                          # (4H,)

    wih_t = (params["w_ih"].T * gate_scale[None, :]).astype(jnp.bfloat16)   # (D, 4H)
    whh_t = (params["w_hh"].T * gate_scale[None, :]).astype(jnp.bfloat16)   # (H, 4H)
    b_lstm = ((params["b_ih"] + params["b_hh"]) * gate_scale).reshape(1, G)  # (1, 4H) f32

    w1_p = jnp.pad(params["w1"].T, ((0, 0), (0, P - 64))).astype(jnp.bfloat16)       # (H, 128)
    w2_p = jnp.pad(params["w2"].T, ((0, P - 64), (0, P - 32))).astype(jnp.bfloat16)  # (128, 128)
    w3_p = jnp.pad(params["w3"], ((0, 0), (0, P - 32)))                               # (1, 128) f32
    b_head = jnp.stack([
        jnp.pad(params["b1"], (0, P - 64)),
        jnp.pad(params["b2"], (0, P - 32)),
        jnp.broadcast_to(params["b3"], (P,)),
    ])                                                              # (3, 128) f32

    return {"wih_t": wih_t, "whh_t": whh_t, "b_lstm": b_lstm,
            "w1_p": w1_p, "w2_p": w2_p, "w3_p": w3_p, "b_head": b_head}


def optimized_lstm_forward(x, prepped, hidden_size):
    """x: (B, T, D) float32, batch_first (PyTorch convention). Returns (B, 1)."""
    B, T, D = x.shape
    H = hidden_size
    P = _HEAD_PAD

    # Per-call plumbing only: time-major flatten + bf16 cast of activations.
    x_flat = jnp.transpose(x, (1, 0, 2)).reshape(T * B, D).astype(jnp.bfloat16)

    kernel = functools.partial(_lstm_head_kernel, T, B, H)
    vmem = pl.BlockSpec(memory_space=pltpu.MemorySpace.VMEM)

    out = pl.pallas_call(
        kernel,
        out_shape=jax.ShapeDtypeStruct((B, P), jnp.float32),
        in_specs=[vmem] * 8,
        out_specs=vmem,
        compiler_params=pltpu.CompilerParams(vmem_limit_bytes=32 * 1024 * 1024),
    )(x_flat, prepped["wih_t"], prepped["whh_t"], prepped["b_lstm"],
      prepped["w1_p"], prepped["w2_p"], prepped["w3_p"], prepped["b_head"])
    return out[:, :1]   # lane-dense store in the kernel; slice to (B, 1) here


def reference_forward(x, params, hidden_size):
    """Pure-f32 JAX reference matching nn.LSTM (i,f,g,o order) + MLP head."""
    B, T, D = x.shape
    H = hidden_size

    def step(carry, x_t):
        h, c = carry
        gates = (x_t @ params["w_ih"].T + params["b_ih"]
                 + h @ params["w_hh"].T + params["b_hh"])
        i = jax.nn.sigmoid(gates[:, 0 * H:1 * H])
        f = jax.nn.sigmoid(gates[:, 1 * H:2 * H])
        g = jnp.tanh(gates[:, 2 * H:3 * H])
        o = jax.nn.sigmoid(gates[:, 3 * H:4 * H])
        c = f * c + i * g
        h = o * jnp.tanh(c)
        return (h, c), None

    h0 = jnp.zeros((B, H), jnp.float32)
    c0 = jnp.zeros((B, H), jnp.float32)
    (h_last, _), _ = lax.scan(step, (h0, c0), jnp.transpose(x, (1, 0, 2)))
    y = jnp.maximum(h_last @ params["w1"].T + params["b1"], 0.0)
    y = jnp.maximum(y @ params["w2"].T + params["b2"], 0.0)
    return y @ params["w3"].T + params["b3"]


def reference_forward_matched(x, prepped, hidden_size):
    """Pure-JAX reference replicating the kernel's exact numerics
    (bf16 matmul operands, f32 accumulation/state, tanh-fused sigmoid)."""
    B, T, D = x.shape
    H = hidden_size
    x_flat = jnp.transpose(x, (1, 0, 2)).reshape(T * B, D).astype(jnp.bfloat16)
    xw = (jnp.dot(x_flat, prepped["wih_t"], preferred_element_type=jnp.float32)
          + prepped["b_lstm"])
    h = jnp.zeros((B, H), jnp.float32)
    c = jnp.zeros((B, H), jnp.float32)
    for t in range(T):
        gates = xw[t * B:(t + 1) * B, :] + jnp.dot(
            h.astype(jnp.bfloat16), prepped["whh_t"],
            preferred_element_type=jnp.float32)
        tg = jnp.tanh(gates)
        i = 0.5 * tg[:, 0 * H:1 * H] + 0.5
        f = 0.5 * tg[:, 1 * H:2 * H] + 0.5
        g = tg[:, 2 * H:3 * H]
        o = 0.5 * tg[:, 3 * H:4 * H] + 0.5
        c = f * c + i * g
        h = o * jnp.tanh(c)
    y = jnp.maximum(
        jnp.dot(h.astype(jnp.bfloat16), prepped["w1_p"],
                preferred_element_type=jnp.float32) + prepped["b_head"][0:1, :], 0.0)
    y = jnp.maximum(
        jnp.dot(y.astype(jnp.bfloat16), prepped["w2_p"],
                preferred_element_type=jnp.float32) + prepped["b_head"][1:2, :], 0.0)
    y3 = jnp.sum(y * prepped["w3_p"], axis=-1, keepdims=True)
    return y3 + prepped["b_head"][2:3, :1]


def init_params(key, input_dim, hidden_size):
    """Deterministic init; shapes mirror nn.LSTM / nn.Linear parameters."""
    H = hidden_size
    ks = jax.random.split(key, 10)
    u = lambda k, shape, bound: jax.random.uniform(
        k, shape, jnp.float32, -bound, bound)
    s_lstm = 1.0 / jnp.sqrt(H)
    return {
        "w_ih": u(ks[0], (4 * H, input_dim), s_lstm),
        "w_hh": u(ks[1], (4 * H, H), s_lstm),
        "b_ih": u(ks[2], (4 * H,), s_lstm),
        "b_hh": u(ks[3], (4 * H,), s_lstm),
        "w1": u(ks[4], (64, H), 1.0 / jnp.sqrt(H)),
        "b1": u(ks[5], (64,), 1.0 / jnp.sqrt(H)),
        "w2": u(ks[6], (32, 64), 1.0 / jnp.sqrt(64)),
        "b2": u(ks[7], (32,), 1.0 / jnp.sqrt(64)),
        "w3": u(ks[8], (1, 32), 1.0 / jnp.sqrt(32)),
        "b3": u(ks[9], (1,), 1.0 / jnp.sqrt(32)),
    }


if __name__ == "__main__":
    B, T, D, H = 2, 8, 16, 32

    key = jax.random.PRNGKey(0)
    k_x, k_p = jax.random.split(key)
    x = jax.random.normal(k_x, (B, T, D), jnp.float32)
    params = init_params(k_p, D, H)
    prepped = prepare_params(params, H)   # one-time, off the per-call path

    out = optimized_lstm_forward(x, prepped, H)
    out = jax.block_until_ready(out)
    assert out.shape == (B, 1), out.shape

    # (1) Tight check against a pure-JAX reference that replicates the kernel's
    #     numerics exactly (bf16 matmul operands + tanh-fused sigmoid).
    ref_matched = reference_forward_matched(x, prepped, H)
    assert jnp.allclose(out, ref_matched, atol=1e-4, rtol=1e-4), (out, ref_matched)

    # (2) Sanity band against the full-f32 PyTorch-equivalent reference
    #     (tolerance loosened because the MXU operands are bf16, per review).
    ref_f32 = reference_forward(x, params, H)
    assert jnp.allclose(out, ref_f32, atol=1e-1, rtol=1e-1), (out, ref_f32)

    print("KERNEL_OK")
</pallas_src>

<mosaic_0001>
module attributes {stable_mosaic.version = 11 : i64} {
  func.func @_lstm_head_kernel(%arg0: memref<16x16xbf16, #tpu.memory_space<vmem>>, %arg1: memref<16x128xbf16, #tpu.memory_space<vmem>>, %arg2: memref<32x128xbf16, #tpu.memory_space<vmem>>, %arg3: memref<1x128xf32, #tpu.memory_space<vmem>>, %arg4: memref<32x128xbf16, #tpu.memory_space<vmem>>, %arg5: memref<128x128xbf16, #tpu.memory_space<vmem>>, %arg6: memref<1x128xf32, #tpu.memory_space<vmem>>, %arg7: memref<3x128xf32, #tpu.memory_space<vmem>>, %arg8: memref<2x128xf32, #tpu.memory_space<vmem>>) attributes {dimension_semantics = [], scalar_prefetch = 0 : i64, scratch_operands = 0 : i64, tpu.core_type = #tpu.core_type<tc>} {
    %c0 = arith.constant 0 : index
    %c0_0 = arith.constant 0 : index
    %0 = vector.load %arg0[%c0, %c0_0] : memref<16x16xbf16, #tpu.memory_space<vmem>>, vector<16x16xbf16>
    %c0_1 = arith.constant 0 : index
    %c0_2 = arith.constant 0 : index
    %1 = vector.load %arg1[%c0_1, %c0_2] : memref<16x128xbf16, #tpu.memory_space<vmem>>, vector<16x128xbf16>
    %cst = arith.constant dense<0.000000e+00> : vector<16x128xf32>
    %2 = tpu.matmul %0, %1, %cst {dimension_numbers = #tpu.dot_dimension_numbers<[1], [0], [0], [1], [0, 0, 1, 1], [], []>} : vector<16x16xbf16>, vector<16x128xbf16>, vector<16x128xf32> -> vector<16x128xf32>
    %c0_3 = arith.constant 0 : index
    %c0_4 = arith.constant 0 : index
    %3 = vector.load %arg3[%c0_3, %c0_4] : memref<1x128xf32, #tpu.memory_space<vmem>>, vector<1x128xf32>
    %4 = vector.broadcast %3 : vector<1x128xf32> to vector<16x128xf32>
    %5 = arith.addf %2, %4 : vector<16x128xf32>
    %c0_5 = arith.constant 0 : index
    %c0_6 = arith.constant 0 : index
    %6 = vector.load %arg2[%c0_5, %c0_6] : memref<32x128xbf16, #tpu.memory_space<vmem>>, vector<32x128xbf16>
    %7 = tpu.iota {dimensions = array<i32: 1>} : vector<1x128xi32>
    %c64_i32 = arith.constant 64 : i32
    %8 = vector.broadcast %c64_i32 : i32 to vector<1x128xi32>
    %9 = arith.cmpi sge, %7, %8 : vector<1x128xi32>
    %c96_i32 = arith.constant 96 : i32
    %10 = vector.broadcast %c96_i32 : i32 to vector<1x128xi32>
    %11 = arith.cmpi slt, %7, %10 : vector<1x128xi32>
    %12 = arith.andi %9, %11 : vector<1x128xi1>
    %cst_7 = arith.constant 1.000000e+00 : f32
    %cst_8 = arith.constant 5.000000e-01 : f32
    %13 = vector.broadcast %cst_7 : f32 to vector<1x128xf32>
    %14 = vector.broadcast %cst_8 : f32 to vector<1x128xf32>
    %15 = arith.select %12, %13, %14 : vector<1x128xi1>, vector<1x128xf32>
    %cst_9 = arith.constant 0.000000e+00 : f32
    %cst_10 = arith.constant 5.000000e-01 : f32
    %16 = vector.broadcast %cst_9 : f32 to vector<1x128xf32>
    %17 = vector.broadcast %cst_10 : f32 to vector<1x128xf32>
    %18 = arith.select %12, %16, %17 : vector<1x128xi1>, vector<1x128xf32>
    %cst_11 = arith.constant 0.000000e+00 : f32
    %19 = vector.broadcast %cst_11 : f32 to vector<2x32xf32>
    %cst_12 = arith.constant 0.000000e+00 : f32
    %20 = vector.broadcast %cst_12 : f32 to vector<2x32xf32>
    %21 = vector.extract_strided_slice %5 {offsets = [0, 0], sizes = [2, 128], strides = [1, 1]} : vector<16x128xf32> to vector<2x128xf32>
    %22 = arith.truncf %19 : vector<2x32xf32> to vector<2x32xbf16>
    %cst_13 = arith.constant dense<0.000000e+00> : vector<2x128xf32>
    %23 = tpu.matmul %22, %6, %cst_13 {dimension_numbers = #tpu.dot_dimension_numbers<[1], [0], [0], [1], [0, 0, 1, 1], [], []>} : vector<2x32xbf16>, vector<32x128xbf16>, vector<2x128xf32> -> vector<2x128xf32>
    %24 = arith.addf %21, %23 : vector<2x128xf32>
    %25 = math.tanh %24 : vector<2x128xf32>
    %26 = vector.broadcast %15 : vector<1x128xf32> to vector<2x128xf32>
    %27 = arith.mulf %25, %26 : vector<2x128xf32>
    %28 = vector.broadcast %18 : vector<1x128xf32> to vector<2x128xf32>
    %29 = arith.addf %27, %28 : vector<2x128xf32>
    %30 = vector.extract_strided_slice %29 {offsets = [0, 0], sizes = [2, 32], strides = [1, 1]} : vector<2x128xf32> to vector<2x32xf32>
    %31 = vector.extract_strided_slice %29 {offsets = [0, 32], sizes = [2, 32], strides = [1, 1]} : vector<2x128xf32> to vector<2x32xf32>
    %32 = vector.extract_strided_slice %29 {offsets = [0, 64], sizes = [2, 32], strides = [1, 1]} : vector<2x128xf32> to vector<2x32xf32>
    %33 = vector.extract_strided_slice %29 {offsets = [0, 96], sizes = [2, 32], strides = [1, 1]} : vector<2x128xf32> to vector<2x32xf32>
    %34 = arith.mulf %31, %20 : vector<2x32xf32>
    %35 = arith.mulf %30, %32 : vector<2x32xf32>
    %36 = arith.addf %34, %35 : vector<2x32xf32>
    %37 = math.tanh %36 : vector<2x32xf32>
    %38 = arith.mulf %33, %37 : vector<2x32xf32>
    %39 = vector.extract_strided_slice %5 {offsets = [2, 0], sizes = [2, 128], strides = [1, 1]} : vector<16x128xf32> to vector<2x128xf32>
    %40 = arith.truncf %38 : vector<2x32xf32> to vector<2x32xbf16>
    %cst_14 = arith.constant dense<0.000000e+00> : vector<2x128xf32>
    %41 = tpu.matmul %40, %6, %cst_14 {dimension_numbers = #tpu.dot_dimension_numbers<[1], [0], [0], [1], [0, 0, 1, 1], [], []>} : vector<2x32xbf16>, vector<32x128xbf16>, vector<2x128xf32> -> vector<2x128xf32>
    %42 = arith.addf %39, %41 : vector<2x128xf32>
    %43 = math.tanh %42 : vector<2x128xf32>
    %44 = vector.broadcast %15 : vector<1x128xf32> to vector<2x128xf32>
    %45 = arith.mulf %43, %44 : vector<2x128xf32>
    %46 = vector.broadcast %18 : vector<1x128xf32> to vector<2x128xf32>
    %47 = arith.addf %45, %46 : vector<2x128xf32>
    %48 = vector.extract_strided_slice %47 {offsets = [0, 0], sizes = [2, 32], strides = [1, 1]} : vector<2x128xf32> to vector<2x32xf32>
    %49 = vector.extract_strided_slice %47 {offsets = [0, 32], sizes = [2, 32], strides = [1, 1]} : vector<2x128xf32> to vector<2x32xf32>
    %50 = vector.extract_strided_slice %47 {offsets = [0, 64], sizes = [2, 32], strides = [1, 1]} : vector<2x128xf32> to vector<2x32xf32>
    %51 = vector.extract_strided_slice %47 {offsets = [0, 96], sizes = [2, 32], strides = [1, 1]} : vector<2x128xf32> to vector<2x32xf32>
    %52 = arith.mulf %49, %36 : vector<2x32xf32>
    %53 = arith.mulf %48, %50 : vector<2x32xf32>
    %54 = arith.addf %52, %53 : vector<2x32xf32>
    %55 = math.tanh %54 : vector<2x32xf32>
    %56 = arith.mulf %51, %55 : vector<2x32xf32>
    %57 = vector.extract_strided_slice %5 {offsets = [4, 0], sizes = [2, 128], strides = [1, 1]} : vector<16x128xf32> to vector<2x128xf32>
    %58 = arith.truncf %56 : vector<2x32xf32> to vector<2x32xbf16>
    %cst_15 = arith.constant dense<0.000000e+00> : vector<2x128xf32>
    %59 = tpu.matmul %58, %6, %cst_15 {dimension_numbers = #tpu.dot_dimension_numbers<[1], [0], [0], [1], [0, 0, 1, 1], [], []>} : vector<2x32xbf16>, vector<32x128xbf16>, vector<2x128xf32> -> vector<2x128xf32>
    %60 = arith.addf %57, %59 : vector<2x128xf32>
    %61 = math.tanh %60 : vector<2x128xf32>
    %62 = vector.broadcast %15 : vector<1x128xf32> to vector<2x128xf32>
    %63 = arith.mulf %61, %62 : vector<2x128xf32>
    %64 = vector.broadcast %18 : vector<1x128xf32> to vector<2x128xf32>
    %65 = arith.addf %63, %64 : vector<2x128xf32>
    %66 = vector.extract_strided_slice %65 {offsets = [0, 0], sizes = [2, 32], strides = [1, 1]} : vector<2x128xf32> to vector<2x32xf32>
    %67 = vector.extract_strided_slice %65 {offsets = [0, 32], sizes = [2, 32], strides = [1, 1]} : vector<2x128xf32> to vector<2x32xf32>
    %68 = vector.extract_strided_slice %65 {offsets = [0, 64], sizes = [2, 32], strides = [1, 1]} : vector<2x128xf32> to vector<2x32xf32>
    %69 = vector.extract_strided_slice %65 {offsets = [0, 96], sizes = [2, 32], strides = [1, 1]} : vector<2x128xf32> to vector<2x32xf32>
    %70 = arith.mulf %67, %54 : vector<2x32xf32>
    %71 = arith.mulf %66, %68 : vector<2x32xf32>
    %72 = arith.addf %70, %71 : vector<2x32xf32>
    %73 = math.tanh %72 : vector<2x32xf32>
    %74 = arith.mulf %69, %73 : vector<2x32xf32>
    %75 = vector.extract_strided_slice %5 {offsets = [6, 0], sizes = [2, 128], strides = [1, 1]} : vector<16x128xf32> to vector<2x128xf32>
    %76 = arith.truncf %74 : vector<2x32xf32> to vector<2x32xbf16>
    %cst_16 = arith.constant dense<0.000000e+00> : vector<2x128xf32>
    %77 = tpu.matmul %76, %6, %cst_16 {dimension_numbers = #tpu.dot_dimension_numbers<[1], [0], [0], [1], [0, 0, 1, 1], [], []>} : vector<2x32xbf16>, vector<32x128xbf16>, vector<2x128xf32> -> vector<2x128xf32>
    %78 = arith.addf %75, %77 : vector<2x128xf32>
    %79 = math.tanh %78 : vector<2x128xf32>
    %80 = vector.broadcast %15 : vector<1x128xf32> to vector<2x128xf32>
    %81 = arith.mulf %79, %80 : vector<2x128xf32>
    %82 = vector.broadcast %18 : vector<1x128xf32> to vector<2x128xf32>
    %83 = arith.addf %81, %82 : vector<2x128xf32>
    %84 = vector.extract_strided_slice %83 {offsets = [0, 0], sizes = [2, 32], strides = [1, 1]} : vector<2x128xf32> to vector<2x32xf32>
    %85 = vector.extract_strided_slice %83 {offsets = [0, 32], sizes = [2, 32], strides = [1, 1]} : vector<2x128xf32> to vector<2x32xf32>
    %86 = vector.extract_strided_slice %83 {offsets = [0, 64], sizes = [2, 32], strides = [1, 1]} : vector<2x128xf32> to vector<2x32xf32>
    %87 = vector.extract_strided_slice %83 {offsets = [0, 96], sizes = [2, 32], strides = [1, 1]} : vector<2x128xf32> to vector<2x32xf32>
    %88 = arith.mulf %85, %72 : vector<2x32xf32>
    %89 = arith.mulf %84, %86 : vector<2x32xf32>
    %90 = arith.addf %88, %89 : vector<2x32xf32>
    %91 = math.tanh %90 : vector<2x32xf32>
    %92 = arith.mulf %87, %91 : vector<2x32xf32>
    %93 = vector.extract_strided_slice %5 {offsets = [8, 0], sizes = [2, 128], strides = [1, 1]} : vector<16x128xf32> to vector<2x128xf32>
    %94 = arith.truncf %92 : vector<2x32xf32> to vector<2x32xbf16>
    %cst_17 = arith.constant dense<0.000000e+00> : vector<2x128xf32>
    %95 = tpu.matmul %94, %6, %cst_17 {dimension_numbers = #tpu.dot_dimension_numbers<[1], [0], [0], [1], [0, 0, 1, 1], [], []>} : vector<2x32xbf16>, vector<32x128xbf16>, vector<2x128xf32> -> vector<2x128xf32>
    %96 = arith.addf %93, %95 : vector<2x128xf32>
    %97 = math.tanh %96 : vector<2x128xf32>
    %98 = vector.broadcast %15 : vector<1x128xf32> to vector<2x128xf32>
    %99 = arith.mulf %97, %98 : vector<2x128xf32>
    %100 = vector.broadcast %18 : vector<1x128xf32> to vector<2x128xf32>
    %101 = arith.addf %99, %100 : vector<2x128xf32>
    %102 = vector.extract_strided_slice %101 {offsets = [0, 0], sizes = [2, 32], strides = [1, 1]} : vector<2x128xf32> to vector<2x32xf32>
    %103 = vector.extract_strided_slice %101 {offsets = [0, 32], sizes = [2, 32], strides = [1, 1]} : vector<2x128xf32> to vector<2x32xf32>
    %104 = vector.extract_strided_slice %101 {offsets = [0, 64], sizes = [2, 32], strides = [1, 1]} : vector<2x128xf32> to vector<2x32xf32>
    %105 = vector.extract_strided_slice %101 {offsets = [0, 96], sizes = [2, 32], strides = [1, 1]} : vector<2x128xf32> to vector<2x32xf32>
    %106 = arith.mulf %103, %90 : vector<2x32xf32>
    %107 = arith.mulf %102, %104 : vector<2x32xf32>
    %108 = arith.addf %106, %107 : vector<2x32xf32>
    %109 = math.tanh %108 : vector<2x32xf32>
    %110 = arith.mulf %105, %109 : vector<2x32xf32>
    %111 = vector.extract_strided_slice %5 {offsets = [10, 0], sizes = [2, 128], strides = [1, 1]} : vector<16x128xf32> to vector<2x128xf32>
    %112 = arith.truncf %110 : vector<2x32xf32> to vector<2x32xbf16>
    %cst_18 = arith.constant dense<0.000000e+00> : vector<2x128xf32>
    %113 = tpu.matmul %112, %6, %cst_18 {dimension_numbers = #tpu.dot_dimension_numbers<[1], [0], [0], [1], [0, 0, 1, 1], [], []>} : vector<2x32xbf16>, vector<32x128xbf16>, vector<2x128xf32> -> vector<2x128xf32>
    %114 = arith.addf %111, %113 : vector<2x128xf32>
    %115 = math.tanh %114 : vector<2x128xf32>
    %116 = vector.broadcast %15 : vector<1x128xf32> to vector<2x128xf32>
    %117 = arith.mulf %115, %116 : vector<2x128xf32>
    %118 = vector.broadcast %18 : vector<1x128xf32> to vector<2x128xf32>
    %119 = arith.addf %117, %118 : vector<2x128xf32>
    %120 = vector.extract_strided_slice %119 {offsets = [0, 0], sizes = [2, 32], strides = [1, 1]} : vector<2x128xf32> to vector<2x32xf32>
    %121 = vector.extract_strided_slice %119 {offsets = [0, 32], sizes = [2, 32], strides = [1, 1]} : vector<2x128xf32> to vector<2x32xf32>
    %122 = vector.extract_strided_slice %119 {offsets = [0, 64], sizes = [2, 32], strides = [1, 1]} : vector<2x128xf32> to vector<2x32xf32>
    %123 = vector.extract_strided_slice %119 {offsets = [0, 96], sizes = [2, 32], strides = [1, 1]} : vector<2x128xf32> to vector<2x32xf32>
    %124 = arith.mulf %121, %108 : vector<2x32xf32>
    %125 = arith.mulf %120, %122 : vector<2x32xf32>
    %126 = arith.addf %124, %125 : vector<2x32xf32>
    %127 = math.tanh %126 : vector<2x32xf32>
    %128 = arith.mulf %123, %127 : vector<2x32xf32>
    %129 = vector.extract_strided_slice %5 {offsets = [12, 0], sizes = [2, 128], strides = [1, 1]} : vector<16x128xf32> to vector<2x128xf32>
    %130 = arith.truncf %128 : vector<2x32xf32> to vector<2x32xbf16>
    %cst_19 = arith.constant dense<0.000000e+00> : vector<2x128xf32>
    %131 = tpu.matmul %130, %6, %cst_19 {dimension_numbers = #tpu.dot_dimension_numbers<[1], [0], [0], [1], [0, 0, 1, 1], [], []>} : vector<2x32xbf16>, vector<32x128xbf16>, vector<2x128xf32> -> vector<2x128xf32>
    %132 = arith.addf %129, %131 : vector<2x128xf32>
    %133 = math.tanh %132 : vector<2x128xf32>
    %134 = vector.broadcast %15 : vector<1x128xf32> to vector<2x128xf32>
    %135 = arith.mulf %133, %134 : vector<2x128xf32>
    %136 = vector.broadcast %18 : vector<1x128xf32> to vector<2x128xf32>
    %137 = arith.addf %135, %136 : vector<2x128xf32>
    %138 = vector.extract_strided_slice %137 {offsets = [0, 0], sizes = [2, 32], strides = [1, 1]} : vector<2x128xf32> to vector<2x32xf32>
    %139 = vector.extract_strided_slice %137 {offsets = [0, 32], sizes = [2, 32], strides = [1, 1]} : vector<2x128xf32> to vector<2x32xf32>
    %140 = vector.extract_strided_slice %137 {offsets = [0, 64], sizes = [2, 32], strides = [1, 1]} : vector<2x128xf32> to vector<2x32xf32>
    %141 = vector.extract_strided_slice %137 {offsets = [0, 96], sizes = [2, 32], strides = [1, 1]} : vector<2x128xf32> to vector<2x32xf32>
    %142 = arith.mulf %139, %126 : vector<2x32xf32>
    %143 = arith.mulf %138, %140 : vector<2x32xf32>
    %144 = arith.addf %142, %143 : vector<2x32xf32>
    %145 = math.tanh %144 : vector<2x32xf32>
    %146 = arith.mulf %141, %145 : vector<2x32xf32>
    %147 = vector.extract_strided_slice %5 {offsets = [14, 0], sizes = [2, 128], strides = [1, 1]} : vector<16x128xf32> to vector<2x128xf32>
    %148 = arith.truncf %146 : vector<2x32xf32> to vector<2x32xbf16>
    %cst_20 = arith.constant dense<0.000000e+00> : vector<2x128xf32>
    %149 = tpu.matmul %148, %6, %cst_20 {dimension_numbers = #tpu.dot_dimension_numbers<[1], [0], [0], [1], [0, 0, 1, 1], [], []>} : vector<2x32xbf16>, vector<32x128xbf16>, vector<2x128xf32> -> vector<2x128xf32>
    %150 = arith.addf %147, %149 : vector<2x128xf32>
    %151 = math.tanh %150 : vector<2x128xf32>
    %152 = vector.broadcast %15 : vector<1x128xf32> to vector<2x128xf32>
    %153 = arith.mulf %151, %152 : vector<2x128xf32>
    %154 = vector.broadcast %18 : vector<1x128xf32> to vector<2x128xf32>
    %155 = arith.addf %153, %154 : vector<2x128xf32>
    %156 = vector.extract_strided_slice %155 {offsets = [0, 0], sizes = [2, 32], strides = [1, 1]} : vector<2x128xf32> to vector<2x32xf32>
    %157 = vector.extract_strided_slice %155 {offsets = [0, 32], sizes = [2, 32], strides = [1, 1]} : vector<2x128xf32> to vector<2x32xf32>
    %158 = vector.extract_strided_slice %155 {offsets = [0, 64], sizes = [2, 32], strides = [1, 1]} : vector<2x128xf32> to vector<2x32xf32>
    %159 = vector.extract_strided_slice %155 {offsets = [0, 96], sizes = [2, 32], strides = [1, 1]} : vector<2x128xf32> to vector<2x32xf32>
    %160 = arith.mulf %157, %144 : vector<2x32xf32>
    %161 = arith.mulf %156, %158 : vector<2x32xf32>
    %162 = arith.addf %160, %161 : vector<2x32xf32>
    %163 = math.tanh %162 : vector<2x32xf32>
    %164 = arith.mulf %159, %163 : vector<2x32xf32>
    %165 = arith.truncf %164 : vector<2x32xf32> to vector<2x32xbf16>
    %c0_21 = arith.constant 0 : index
    %c0_22 = arith.constant 0 : index
    %166 = vector.load %arg4[%c0_21, %c0_22] : memref<32x128xbf16, #tpu.memory_space<vmem>>, vector<32x128xbf16>
    %cst_23 = arith.constant dense<0.000000e+00> : vector<2x128xf32>
    %167 = tpu.matmul %165, %166, %cst_23 {dimension_numbers = #tpu.dot_dimension_numbers<[1], [0], [0], [1], [0, 0, 1, 1], [], []>} : vector<2x32xbf16>, vector<32x128xbf16>, vector<2x128xf32> -> vector<2x128xf32>
    %c0_24 = arith.constant 0 : index
    %c0_25 = arith.constant 0 : index
    %168 = vector.load %arg7[%c0_24, %c0_25] : memref<3x128xf32, #tpu.memory_space<vmem>>, vector<1x128xf32>
    %169 = vector.broadcast %168 : vector<1x128xf32> to vector<2x128xf32>
    %170 = arith.addf %167, %169 : vector<2x128xf32>
    %cst_26 = arith.constant 0.000000e+00 : f32
    %171 = vector.broadcast %cst_26 : f32 to vector<2x128xf32>
    %172 = arith.maximumf %170, %171 : vector<2x128xf32>
    %173 = arith.truncf %172 : vector<2x128xf32> to vector<2x128xbf16>
    %c0_27 = arith.constant 0 : index
    %c0_28 = arith.constant 0 : index
    %174 = vector.load %arg5[%c0_27, %c0_28] : memref<128x128xbf16, #tpu.memory_space<vmem>>, vector<128x128xbf16>
    %cst_29 = arith.constant dense<0.000000e+00> : vector<2x128xf32>
    %175 = tpu.matmul %173, %174, %cst_29 {dimension_numbers = #tpu.dot_dimension_numbers<[1], [0], [0], [1], [0, 0, 1, 1], [], []>} : vector<2x128xbf16>, vector<128x128xbf16>, vector<2x128xf32> -> vector<2x128xf32>
    %c1 = arith.constant 1 : index
    %c0_30 = arith.constant 0 : index
    %176 = vector.load %arg7[%c1, %c0_30] : memref<3x128xf32, #tpu.memory_space<vmem>>, vector<1x128xf32>
    %177 = vector.broadcast %176 : vector<1x128xf32> to vector<2x128xf32>
    %178 = arith.addf %175, %177 : vector<2x128xf32>
    %cst_31 = arith.constant 0.000000e+00 : f32
    %179 = vector.broadcast %cst_31 : f32 to vector<2x128xf32>
    %180 = arith.maximumf %178, %179 : vector<2x128xf32>
    %c0_32 = arith.constant 0 : index
    %c0_33 = arith.constant 0 : index
    %181 = vector.load %arg6[%c0_32, %c0_33] : memref<1x128xf32, #tpu.memory_space<vmem>>, vector<1x128xf32>
    %182 = vector.broadcast %181 : vector<1x128xf32> to vector<2x128xf32>
    %183 = arith.mulf %180, %182 : vector<2x128xf32>
    %cst_34 = arith.constant dense<0.000000e+00> : vector<2xf32>
    %184 = vector.multi_reduction <add>, %183, %cst_34 [1] : vector<2x128xf32> to vector<2xf32>
    %185 = vector.shape_cast %184 : vector<2xf32> to vector<2x1xf32>
    %c2 = arith.constant 2 : index
    %c0_35 = arith.constant 0 : index
    %186 = vector.load %arg7[%c2, %c0_35] : memref<3x128xf32, #tpu.memory_space<vmem>>, vector<1x128xf32>
    %187 = vector.broadcast %185 : vector<2x1xf32> to vector<2x128xf32>
    %188 = vector.broadcast %186 : vector<1x128xf32> to vector<2x128xf32>
    %189 = arith.addf %187, %188 : vector<2x128xf32>
    %c0_36 = arith.constant 0 : index
    %c0_37 = arith.constant 0 : index
    %190 = vector.load %arg8[%c0_36, %c0_37] : memref<2x128xf32, #tpu.memory_space<vmem>>, vector<2x128xf32>
    tpu.vector_store %arg8[%c0_36, %c0_37], %189 {strides = array<i32>} : memref<2x128xf32, #tpu.memory_space<vmem>>, vector<2x128xf32>,
    return
  }
}

</mosaic_0001>

<llo_original>
// kernel: tpu_custom_call.1
$region0: #{tpu_custom_call.1}
  #allocation0 [shape = 'u32[]', space=smem, size = 0x4, offset = 0x4, fixed_abs, tag = 'smem constant byte address 0x4 - core index']
  #allocation1 [shape = 'u32[144,128]{1,0:T(1,128)}', space=vmem, size = 0x12000, scoped, tag = 'internal scratch']
  %s0 = inlined_call_operand.hbm [shape: bf16[16,16], index: 0, kind: input, shape index: {}]
  %s1 = inlined_call_operand.hbm [shape: bf16[16,128], index: 1, kind: input, shape index: {}]
  %s2 = inlined_call_operand.hbm [shape: bf16[32,128], index: 2, kind: input, shape index: {}]
  %s3 = inlined_call_operand.vmem [shape: f32[1,128], index: 3, kind: input, shape index: {}]
  %s4 = inlined_call_operand.hbm [shape: bf16[32,128], index: 4, kind: input, shape index: {}]
  %s5 = inlined_call_operand.hbm [shape: bf16[128,128], index: 5, kind: input, shape index: {}]
  %s6 = inlined_call_operand.vmem [shape: f32[1,128], index: 6, kind: input, shape index: {}]
  %s7 = inlined_call_operand.vmem [shape: f32[3,128], index: 7, kind: input, shape index: {}]
  %s8 = inlined_call_operand.hbm [shape: f32[2,128], index: 8, kind: output, shape index: {}]
  %s9 = sld [smem:[#allocation0]]
  $region62: #{tpu_custom_call.1} parent=0
    _
  %s11 = ssub.s32 1, %s9
  %s12 = scalar_select 0, %s11, %s9
  $region1: #{tpu_custom_call.1} parent=0
    #allocation2 [shape = 'u8[4096]{0}', space=vmem, size = 0x1000, scoped, tag = 'input window, operand 0, single buffered']
    #allocation3 [shape = 's32[1]{0}', space=sflag, size = 0x4, scoped, tag = 'scoped memory for tpu_custom_call.1']
    #allocation4 [shape = 's32[1]{0}', space=sflag, size = 0x4, scoped, tag = 'scoped memory for tpu_custom_call.1']
    #allocation5 [shape = 'u8[4096]{0}', space=vmem, size = 0x1000, scoped, tag = 'input window, operand 1, single buffered']
    #allocation6 [shape = 's32[1]{0}', space=sflag, size = 0x4, scoped, tag = 'scoped memory for tpu_custom_call.1']
    #allocation7 [shape = 'u8[8192]{0}', space=vmem, size = 0x2000, scoped, tag = 'input window, operand 2, single buffered']
    #allocation8 [shape = 'u8[8192]{0}', space=vmem, size = 0x2000, scoped, tag = 'input window, operand 4, single buffered']
    #allocation9 [shape = 's32[1]{0}', space=sflag, size = 0x4, scoped, tag = 'scoped memory for tpu_custom_call.1']
    #allocation10 [shape = 'u8[32768]{0}', space=vmem, size = 0x8000, scoped, tag = 'input window, operand 5, single buffered']
    #allocation11 [shape = 'u8[1024]{0}', space=vmem, size = 0x400, scoped, tag = 'output window, operand 0, single buffered']
    %13 = vsyncpa [#allocation3], 0
    %14 = vsyncpa [#allocation6], 0
    %15 = vsyncpa [#allocation9], 0
    %16 = vsyncpa [#allocation4], 0
    // Predicated region
    $region2: #{tpu_custom_call.1} parent=1 // pred_check
      _
    $region3: #{tpu_custom_call.1} parent=1 // pred_check_branch
      %18 = sbr.rel (0) target = $region5
    $region4: #{tpu_custom_call.1} parent=1 // pred_region
      %s20 = ssub.s32 128, 128
      %21 = vsyncadd [#allocation3], %s20
      %s22 = sshll.u32 [#allocation2], 4
      %s23 = int_to_ptr.vmem [resolvable:$true] %s22
      %28 = dma.hbm_to_vmem [thread:$0]  %s0, 128, %s23, [#allocation3], 64, 64, 4
    $region5: #{tpu_custom_call.1} parent=1 // pred_fallthru
      _
    // Predicated region
    $region6: #{tpu_custom_call.1} parent=1 // pred_check
      _
    $region7: #{tpu_custom_call.1} parent=1 // pred_check_branch
      %30 = sbr.rel (0) target = $region9
    $region8: #{tpu_custom_call.1} parent=1 // pred_region
      %s32 = ssub.s32 128, 128
      %33 = vsyncadd [#allocation6], %s32
      %s34 = sshll.u32 [#allocation5], 4
      %s35 = int_to_ptr.vmem [resolvable:$true] %s34
      %40 = dma.hbm_to_vmem [thread:$0]  %s1, 128, %s35, [#allocation6], 64, 64, 4
    $region9: #{tpu_custom_call.1} parent=1 // pred_fallthru
      _
    // Predicated region
    $region10: #{tpu_custom_call.1} parent=1 // pred_check
      _
    $region11: #{tpu_custom_call.1} parent=1 // pred_check_branch
      %42 = sbr.rel (0) target = $region13
    $region12: #{tpu_custom_call.1} parent=1 // pred_region
      %s44 = ssub.s32 256, 256
      %45 = vsyncadd [#allocation6], %s44
      %s46 = sshll.u32 [#allocation7], 4
      %s47 = int_to_ptr.vmem [resolvable:$true] %s46
      %52 = dma.hbm_to_vmem [thread:$0]  %s2, 256, %s47, [#allocation6], 64, 64, 4
    $region13: #{tpu_custom_call.1} parent=1 // pred_fallthru
      _
    // Predicated region
    $region14: #{tpu_custom_call.1} parent=1 // pred_check
      _
    $region15: #{tpu_custom_call.1} parent=1 // pred_check_branch
      %54 = sbr.rel (0) target = $region17
    $region16: #{tpu_custom_call.1} parent=1 // pred_region
      _
    $region17: #{tpu_custom_call.1} parent=1 // pred_fallthru
      _
    // Predicated region
    $region18: #{tpu_custom_call.1} parent=1 // pred_check
      _
    $region19: #{tpu_custom_call.1} parent=1 // pred_check_branch
      %56 = sbr.rel (0) target = $region21
    $region20: #{tpu_custom_call.1} parent=1 // pred_region
      %s58 = ssub.s32 256, 256
      %59 = vsyncadd [#allocation9], %s58
      %s60 = sshll.u32 [#allocation8], 4
      %s61 = int_to_ptr.vmem [resolvable:$true] %s60
      %66 = dma.hbm_to_vmem [thread:$0]  %s4, 256, %s61, [#allocation9], 64, 64, 4
    $region21: #{tpu_custom_call.1} parent=1 // pred_fallthru
      _
    // Predicated region
    $region22: #{tpu_custom_call.1} parent=1 // pred_check
      _
    $region23: #{tpu_custom_call.1} parent=1 // pred_check_branch
      %68 = sbr.rel (0) target = $region25
    $region24: #{tpu_custom_call.1} parent=1 // pred_region
      %s70 = ssub.s32 1024, 1024
      %71 = vsyncadd [#allocation9], %s70
      %s72 = sshll.u32 [#allocation10], 4
      %s73 = int_to_ptr.vmem [resolvable:$true] %s72
      %78 = dma.hbm_to_vmem [thread:$0]  %s5, 1024, %s73, [#allocation9], 64, 64, 4
    $region25: #{tpu_custom_call.1} parent=1 // pred_fallthru
      _
    // Predicated region
    $region26: #{tpu_custom_call.1} parent=1 // pred_check
      _
    $region27: #{tpu_custom_call.1} parent=1 // pred_check_branch
      %80 = sbr.rel (0) target = $region29
    $region28: #{tpu_custom_call.1} parent=1 // pred_region
      _
    $region29: #{tpu_custom_call.1} parent=1 // pred_fallthru
      _
    // Predicated region
    $region30: #{tpu_custom_call.1} parent=1 // pred_check
      _
    $region31: #{tpu_custom_call.1} parent=1 // pred_check_branch
      %82 = sbr.rel (0) target = $region33
    $region32: #{tpu_custom_call.1} parent=1 // pred_region
      _
    $region33: #{tpu_custom_call.1} parent=1 // pred_fallthru
      _
    // Predicated region
    $region34: #{tpu_custom_call.1} parent=1 // pred_check
      _
    $region35: #{tpu_custom_call.1} parent=1 // pred_check_branch
      %84 = sbr.rel (0) target = $region37
    $region36: #{tpu_custom_call.1} parent=1 // pred_region
      %85 = dma.done [#allocation3], 128
    $region37: #{tpu_custom_call.1} parent=1 // pred_fallthru
      _
    // Predicated region
    $region38: #{tpu_custom_call.1} parent=1 // pred_check
      _
    $region39: #{tpu_custom_call.1} parent=1 // pred_check_branch
      %87 = sbr.rel (0) target = $region41
    $region40: #{tpu_custom_call.1} parent=1 // pred_region
      %88 = dma.done [#allocation6], 128
    $region41: #{tpu_custom_call.1} parent=1 // pred_fallthru
      _
    // Predicated region
    $region42: #{tpu_custom_call.1} parent=1 // pred_check
      _
    $region43: #{tpu_custom_call.1} parent=1 // pred_check_branch
      %90 = sbr.rel (0) target = $region45
    $region44: #{tpu_custom_call.1} parent=1 // pred_region
      %91 = dma.done [#allocation6], 256
    $region45: #{tpu_custom_call.1} parent=1 // pred_fallthru
      _
    // Predicated region
    $region46: #{tpu_custom_call.1} parent=1 // pred_check
      _
    $region47: #{tpu_custom_call.1} parent=1 // pred_check_branch
      %93 = sbr.rel (0) target = $region49
    $region48: #{tpu_custom_call.1} parent=1 // pred_region
      %94 = dma.done [#allocation9], 256
    $region49: #{tpu_custom_call.1} parent=1 // pred_fallthru
      _
    // Predicated region
    $region50: #{tpu_custom_call.1} parent=1 // pred_check
      _
    $region51: #{tpu_custom_call.1} parent=1 // pred_check_branch
      %96 = sbr.rel (0) target = $region53
    $region52: #{tpu_custom_call.1} parent=1 // pred_region
      %97 = dma.done [#allocation9], 1024
    $region53: #{tpu_custom_call.1} parent=1 // pred_fallthru
      _
    %v99 = vld [vmem:[#allocation2] sm:$0xf]
    %v100 = vld [vmem:[#allocation2 + $0x4] sm:$0xf]
    %v101 = vld [vmem:[#allocation5] sm:$0xf]
    %v102 = vld [vmem:[#allocation5 + $0x4] sm:$0xf]
    %v103 = vld [vmem:[%s3] sm:$0x1]
    %v105 = vlaneseq
    %v106 = vshrl.u32 %v105, 7
    %v107 = vsub.s32 0, %v106
    %v108 = vrot.slane %v103, %v107
    %v112 = vunpack.c.l.b16 %v99
    %v113 = vunpack.c.l.b16 %v100
    %v114 = vpack.c.b16 %v113, %v112
    %v117 = vunpack.c.l.b16 %v101
    %v118 = vunpack.c.l.b16 %v102
    %v119 = vpack.c.b16 %v118, %v117
    %vm121 = vcmask 130048
    %v123 = vsel %vm121, %v114, 0
    %125 = vmatprep.subr.bf16.mxu0 0
    %126 = vmatpush1.bf16.msra.mxu0 %v119
    %127 = vmatprep.subr.bf16.mxu0 0
    %128 = vmatpush1.bf16.msra.mxu0 0
    %129 = vmatprep.subr.bf16.mxu0 0
    %130 = vmatpush1.bf16.msra.mxu0 0
    %131 = vmatprep.subr.bf16.mxu0 0
    %132 = vmatpush1.bf16.msra.mxu0 0
    %133 = vmatprep.subr.bf16.mxu0 0
    %134 = vmatpush1.bf16.msra.mxu0 0
    %135 = vmatprep.subr.bf16.mxu0 0
    %136 = vmatpush1.bf16.msra.mxu0 0
    %137 = vmatprep.subr.bf16.mxu0 0
    %138 = vmatpush1.bf16.msra.mxu0 0
    %139 = vmatprep.subr.bf16.mxu0 0
    %140 = vmatpush1.bf16.msra.mxu0 0
    %141 = vmatprep.subr.bf16.mxu0 0
    %142 = vmatpush1.bf16.msra.mxu0 0
    %143 = vmatprep.subr.bf16.mxu0 0
    %144 = vmatpush1.bf16.msra.mxu0 0
    %145 = vmatprep.subr.bf16.mxu0 0
    %146 = vmatpush1.bf16.msra.mxu0 0
    %147 = vmatprep.subr.bf16.mxu0 0
    %148 = vmatpush1.bf16.msra.mxu0 0
    %149 = vmatprep.subr.bf16.mxu0 0
    %150 = vmatpush1.bf16.msra.mxu0 0
    %151 = vmatprep.subr.bf16.mxu0 0
    %152 = vmatpush1.bf16.msra.mxu0 0
    %153 = vmatprep.subr.bf16.mxu0 0
    %154 = vmatpush1.bf16.msra.mxu0 0
    %155 = vmatprep.subr.bf16.mxu0 0
    %156 = vmatpush1.bf16.msra.mxu0 0
    %157 = vmatprep.mubr.bf16.mxu0 0
    %158 = vmatmul.mubr.bf16.gmra.mrb[0].mxu0 %v123
    %v159 = vpop.f32.mrb[0].mxu0
    %v160 = vadd.f32 %v108, %v159
    %v161 = vpop.f32.mrb[0].mxu0
    %v162 = vpop.f32.mrb[0].mxu0
    %v163 = vadd.f32 %v108, %v162
    %v164 = vpop.f32.mrb[0].mxu0
    %165 = vdwg.mxu0
    %v166 = vld [vmem:[#allocation7] sm:$0xf]
    %v167 = vld [vmem:[#allocation7 + $0x4] sm:$0xf]
    %v168 = vld [vmem:[#allocation7 + $0x8] sm:$0xf]
    %v169 = vld [vmem:[#allocation7 + $0xc] sm:$0xf]
    %v170 = vlaneseq
    %v171 = vand.u32 %v170, 127
    %vm172 = vcmp.ge.s32.totalorder %v171, 64
    %vm173 = vcmp.lt.s32.totalorder %v171, 96
    %vm174 = vmand %vm172, %vm173
    %v175 = vsel %vm174, 1.0, 0.5
    %v176 = vsel %vm174, 0.0, 0.5
    %v181 = vunpack.c.l.b16 %v166
    %v182 = vunpack.c.l.b16 %v167
    %v183 = vunpack.c.l.b16 %v168
    %v184 = vunpack.c.l.b16 %v169
    %v185 = vpack.c.b16 %v182, %v181
    %v186 = vpack.c.b16 %v184, %v183
    %vm189 = vcmask 261120
    %v191 = vsel %vm189, 0, 0
    %193 = vmatprep.subr.bf16.mxu0 0
    %194 = vmatpush1.bf16.msra.mxu0 %v185
    %195 = vmatprep.subr.bf16.mxu0 0
    %196 = vmatpush1.bf16.msra.mxu0 %v186
    %197 = vmatprep.subr.bf16.mxu0 0
    %198 = vmatpush1.bf16.msra.mxu0 0
    %199 = vmatprep.subr.bf16.mxu0 0
    %200 = vmatpush1.bf16.msra.mxu0 0
    %201 = vmatprep.subr.bf16.mxu0 0
    %202 = vmatpush1.bf16.msra.mxu0 0
    %203 = vmatprep.subr.bf16.mxu0 0
    %204 = vmatpush1.bf16.msra.mxu0 0
    %205 = vmatprep.subr.bf16.mxu0 0
    %206 = vmatpush1.bf16.msra.mxu0 0
    %207 = vmatprep.subr.bf16.mxu0 0
    %208 = vmatpush1.bf16.msra.mxu0 0
    %209 = vmatprep.subr.bf16.mxu0 0
    %210 = vmatpush1.bf16.msra.mxu0 0
    %211 = vmatprep.subr.bf16.mxu0 0
    %212 = vmatpush1.bf16.msra.mxu0 0
    %213 = vmatprep.subr.bf16.mxu0 0
    %214 = vmatpush1.bf16.msra.mxu0 0
    %215 = vmatprep.subr.bf16.mxu0 0
    %216 = vmatpush1.bf16.msra.mxu0 0
    %217 = vmatprep.subr.bf16.mxu0 0
    %218 = vmatpush1.bf16.msra.mxu0 0
    %219 = vmatprep.subr.bf16.mxu0 0
    %220 = vmatpush1.bf16.msra.mxu0 0
    %221 = vmatprep.subr.bf16.mxu0 0
    %222 = vmatpush1.bf16.msra.mxu0 0
    %223 = vmatprep.subr.bf16.mxu0 0
    %224 = vmatpush1.bf16.msra.mxu0 0
    %225 = vmatprep.mubr.bf16.mxu0 0
    %226 = vmatmul.mubr.bf16.gmra.mrb[0].mxu0 %v191
    %v227 = vpop.f32.mrb[0].mxu0
    %v228 = vadd.f32 0.0, %v227
    %v229 = vpop.f32.mrb[0].mxu0
    %v230 = vpop.f32.mrb[0].mxu0
    %v231 = vpop.f32.mrb[0].mxu0
    %232 = vdwg.mxu0
    %v233 = vadd.f32 %v160, %v228
    %v234 = vtanh.pop %v233
    %v235 = vmul.f32 %v234, %v175
    %v236 = vadd.f32 %v235, %v176
    %v237 = vmul.f32 %v236, 0.0
    %239 = vrot.lane.b32.xlu0 %v236, 64
    %v240 = vpop.permute.xlu0 %239
    %v242 = vmul.f32 %v236, %v240
    %244 = vrot.lane.b32.xlu0 %v242, 32
    %v245 = vpop.permute.xlu0 %244
    %v247 = vadd.f32 %v237, %v245
    %v248 = vtanh.pop %v247
    %250 = vrot.lane.b32.xlu0 %v248, 64
    %v251 = vpop.permute.xlu0 %250
    %v253 = vmul.f32 %v236, %v251
    %v254 = vpack.c.bf16 %v253, %v253
    %256 = vrot.lane.b32.xlu0 %v254, 32
    %v257 = vpop.permute.xlu0 %256
    %v259 = vsel %vm189, %v257, 0
    %261 = vmatprep.subr.bf16.mxu0 0
    %262 = vmatpush1.bf16.msra.mxu0 %v185
    %263 = vmatprep.subr.bf16.mxu0 0
    %264 = vmatpush1.bf16.msra.mxu0 %v186
    %265 = vmatprep.subr.bf16.mxu0 0
    %266 = vmatpush1.bf16.msra.mxu0 0
    %267 = vmatprep.subr.bf16.mxu0 0
    %268 = vmatpush1.bf16.msra.mxu0 0
    %269 = vmatprep.subr.bf16.mxu0 0
    %270 = vmatpush1.bf16.msra.mxu0 0
    %271 = vmatprep.subr.bf16.mxu0 0
    %272 = vmatpush1.bf16.msra.mxu0 0
    %273 = vmatprep.subr.bf16.mxu0 0
    %274 = vmatpush1.bf16.msra.mxu0 0
    %275 = vmatprep.subr.bf16.mxu0 0
    %276 = vmatpush1.bf16.msra.mxu0 0
    %277 = vmatprep.subr.bf16.mxu0 0
    %278 = vmatpush1.bf16.msra.mxu0 0
    %279 = vmatprep.subr.bf16.mxu0 0
    %280 = vmatpush1.bf16.msra.mxu0 0
    %281 = vmatprep.subr.bf16.mxu0 0
    %282 = vmatpush1.bf16.msra.mxu0 0
    %283 = vmatprep.subr.bf16.mxu0 0
    %284 = vmatpush1.bf16.msra.mxu0 0
    %285 = vmatprep.subr.bf16.mxu0 0
    %286 = vmatpush1.bf16.msra.mxu0 0
    %287 = vmatprep.subr.bf16.mxu0 0
    %288 = vmatpush1.bf16.msra.mxu0 0
    %289 = vmatprep.subr.bf16.mxu0 0
    %290 = vmatpush1.bf16.msra.mxu0 0
    %291 = vmatprep.subr.bf16.mxu0 0
    %292 = vmatpush1.bf16.msra.mxu0 0
    %293 = vmatprep.mubr.bf16.mxu0 0
    %294 = vmatmul.mubr.bf16.gmra.mrb[0].mxu0 %v259
    %v295 = vpop.f32.mrb[0].mxu0
    %v296 = vadd.f32 0.0, %v295
    %v297 = vpop.f32.mrb[0].mxu0
    %v298 = vpop.f32.mrb[0].mxu0
    %v299 = vpop.f32.mrb[0].mxu0
    %300 = vdwg.mxu0
    %v302 = vrot.slane %v296, 6
    %v304 = vadd.f32 %v160, %v302
    %v305 = vtanh.pop %v304
    %v306 = vmul.f32 %v305, %v175
    %v307 = vadd.f32 %v306, %v176
    %v309 = vrot.slane %v247, 6
    %v311 = vmul.f32 %v307, %v309
    %313 = vrot.lane.b32.xlu0 %v307, 64
    %v314 = vpop.permute.xlu0 %313
    %v316 = vmul.f32 %v307, %v314
    %318 = vrot.lane.b32.xlu0 %v316, 32
    %v319 = vpop.permute.xlu0 %318
    %v321 = vadd.f32 %v311, %v319
    %v322 = vtanh.pop %v321
    %324 = vrot.lane.b32.xlu0 %v322, 64
    %v325 = vpop.permute.xlu0 %324
    %v327 = vmul.f32 %v307, %v325
    %v328 = vpack.c.bf16 %v327, %v327
    %v330 = vrot.slane %v328, 1
    %331 = vrot.lane.b32.xlu0 %v330, 32
    %v332 = vpop.permute.xlu0 %331
    %v334 = vsel %vm189, %v332, 0
    %336 = vmatprep.subr.bf16.mxu0 0
    %337 = vmatpush1.bf16.msra.mxu0 %v185
    %338 = vmatprep.subr.bf16.mxu0 0
    %339 = vmatpush1.bf16.msra.mxu0 %v186
    %340 = vmatprep.subr.bf16.mxu0 0
    %341 = vmatpush1.bf16.msra.mxu0 0
    %342 = vmatprep.subr.bf16.mxu0 0
    %343 = vmatpush1.bf16.msra.mxu0 0
    %344 = vmatprep.subr.bf16.mxu0 0
    %345 = vmatpush1.bf16.msra.mxu0 0
    %346 = vmatprep.subr.bf16.mxu0 0
    %347 = vmatpush1.bf16.msra.mxu0 0
    %348 = vmatprep.subr.bf16.mxu0 0
    %349 = vmatpush1.bf16.msra.mxu0 0
    %350 = vmatprep.subr.bf16.mxu0 0
    %351 = vmatpush1.bf16.msra.mxu0 0
    %352 = vmatprep.subr.bf16.mxu0 0
    %353 = vmatpush1.bf16.msra.mxu0 0
    %354 = vmatprep.subr.bf16.mxu0 0
    %355 = vmatpush1.bf16.msra.mxu0 0
    %356 = vmatprep.subr.bf16.mxu0 0
    %357 = vmatpush1.bf16.msra.mxu0 0
    %358 = vmatprep.subr.bf16.mxu0 0
    %359 = vmatpush1.bf16.msra.mxu0 0
    %360 = vmatprep.subr.bf16.mxu0 0
    %361 = vmatpush1.bf16.msra.mxu0 0
    %362 = vmatprep.subr.bf16.mxu0 0
    %363 = vmatpush1.bf16.msra.mxu0 0
    %364 = vmatprep.subr.bf16.mxu0 0
    %365 = vmatpush1.bf16.msra.mxu0 0
    %366 = vmatprep.subr.bf16.mxu0 0
    %367 = vmatpush1.bf16.msra.mxu0 0
    %368 = vmatprep.mubr.bf16.mxu0 0
    %369 = vmatmul.mubr.bf16.gmra.mrb[0].mxu0 %v334
    %v370 = vpop.f32.mrb[0].mxu0
    %v371 = vadd.f32 0.0, %v370
    %v372 = vpop.f32.mrb[0].mxu0
    %v373 = vpop.f32.mrb[0].mxu0
    %v374 = vpop.f32.mrb[0].mxu0
    %375 = vdwg.mxu0
    %v377 = vrot.slane %v371, 4
    %v379 = vadd.f32 %v160, %v377
    %v380 = vtanh.pop %v379
    %v381 = vmul.f32 %v380, %v175
    %v382 = vadd.f32 %v381, %v176
    %v384 = vrot.slane %v321, 6
    %v386 = vmul.f32 %v382, %v384
    %388 = vrot.lane.b32.xlu0 %v382, 64
    %v389 = vpop.permute.xlu0 %388
    %v391 = vmul.f32 %v382, %v389
    %393 = vrot.lane.b32.xlu0 %v391, 32
    %v394 = vpop.permute.xlu0 %393
    %v396 = vadd.f32 %v386, %v394
    %v397 = vtanh.pop %v396
    %399 = vrot.lane.b32.xlu0 %v397, 64
    %v400 = vpop.permute.xlu0 %399
    %v402 = vmul.f32 %v382, %v400
    %v403 = vpack.c.bf16 %v402, %v402
    %v405 = vrot.slane %v403, 2
    %406 = vrot.lane.b32.xlu0 %v405, 32
    %v407 = vpop.permute.xlu0 %406
    %v409 = vsel %vm189, %v407, 0
    %411 = vmatprep.subr.bf16.mxu0 0
    %412 = vmatpush1.bf16.msra.mxu0 %v185
    %413 = vmatprep.subr.bf16.mxu0 0
    %414 = vmatpush1.bf16.msra.mxu0 %v186
    %415 = vmatprep.subr.bf16.mxu0 0
    %416 = vmatpush1.bf16.msra.mxu0 0
    %417 = vmatprep.subr.bf16.mxu0 0
    %418 = vmatpush1.bf16.msra.mxu0 0
    %419 = vmatprep.subr.bf16.mxu0 0
    %420 = vmatpush1.bf16.msra.mxu0 0
    %421 = vmatprep.subr.bf16.mxu0 0
    %422 = vmatpush1.bf16.msra.mxu0 0
    %423 = vmatprep.subr.bf16.mxu0 0
    %424 = vmatpush1.bf16.msra.mxu0 0
    %425 = vmatprep.subr.bf16.mxu0 0
    %426 = vmatpush1.bf16.msra.mxu0 0
    %427 = vmatprep.subr.bf16.mxu0 0
    %428 = vmatpush1.bf16.msra.mxu0 0
    %429 = vmatprep.subr.bf16.mxu0 0
    %430 = vmatpush1.bf16.msra.mxu0 0
    %431 = vmatprep.subr.bf16.mxu0 0
    %432 = vmatpush1.bf16.msra.mxu0 0
    %433 = vmatprep.subr.bf16.mxu0 0
    %434 = vmatpush1.bf16.msra.mxu0 0
    %435 = vmatprep.subr.bf16.mxu0 0
    %436 = vmatpush1.bf16.msra.mxu0 0
    %437 = vmatprep.subr.bf16.mxu0 0
    %438 = vmatpush1.bf16.msra.mxu0 0
    %439 = vmatprep.subr.bf16.mxu0 0
    %440 = vmatpush1.bf16.msra.mxu0 0
    %441 = vmatprep.subr.bf16.mxu0 0
    %442 = vmatpush1.bf16.msra.mxu0 0
    %443 = vmatprep.mubr.bf16.mxu0 0
    %444 = vmatmul.mubr.bf16.gmra.mrb[0].mxu0 %v409
    %v445 = vpop.f32.mrb[0].mxu0
    %v446 = vadd.f32 0.0, %v445
    %v447 = vpop.f32.mrb[0].mxu0
    %v448 = vpop.f32.mrb[0].mxu0
    %v449 = vpop.f32.mrb[0].mxu0
    %450 = vdwg.mxu0
    %v452 = vrot.slane %v446, 2
    %v454 = vadd.f32 %v160, %v452
    %v455 = vtanh.pop %v454
    %v456 = vmul.f32 %v455, %v175
    %v457 = vadd.f32 %v456, %v176
    %v459 = vrot.slane %v396, 6
    %v461 = vmul.f32 %v457, %v459
    %463 = vrot.lane.b32.xlu0 %v457, 64
    %v464 = vpop.permute.xlu0 %463
    %v466 = vmul.f32 %v457, %v464
    %468 = vrot.lane.b32.xlu0 %v466, 32
    %v469 = vpop.permute.xlu0 %468
    %v471 = vadd.f32 %v461, %v469
    %v472 = vtanh.pop %v471
    %474 = vrot.lane.b32.xlu0 %v472, 64
    %v475 = vpop.permute.xlu0 %474
    %v477 = vmul.f32 %v457, %v475
    %v478 = vpack.c.bf16 %v477, %v477
    %v480 = vrot.slane %v478, 3
    %481 = vrot.lane.b32.xlu0 %v480, 32
    %v482 = vpop.permute.xlu0 %481
    %v484 = vsel %vm189, %v482, 0
    %486 = vmatprep.subr.bf16.mxu0 0
    %487 = vmatpush1.bf16.msra.mxu0 %v185
    %488 = vmatprep.subr.bf16.mxu0 0
    %489 = vmatpush1.bf16.msra.mxu0 %v186
    %490 = vmatprep.subr.bf16.mxu0 0
    %491 = vmatpush1.bf16.msra.mxu0 0
    %492 = vmatprep.subr.bf16.mxu0 0
    %493 = vmatpush1.bf16.msra.mxu0 0
    %494 = vmatprep.subr.bf16.mxu0 0
    %495 = vmatpush1.bf16.msra.mxu0 0
    %496 = vmatprep.subr.bf16.mxu0 0
    %497 = vmatpush1.bf16.msra.mxu0 0
    %498 = vmatprep.subr.bf16.mxu0 0
    %499 = vmatpush1.bf16.msra.mxu0 0
    %500 = vmatprep.subr.bf16.mxu0 0
    %501 = vmatpush1.bf16.msra.mxu0 0
    %502 = vmatprep.subr.bf16.mxu0 0
    %503 = vmatpush1.bf16.msra.mxu0 0
    %504 = vmatprep.subr.bf16.mxu0 0
    %505 = vmatpush1.bf16.msra.mxu0 0
    %506 = vmatprep.subr.bf16.mxu0 0
    %507 = vmatpush1.bf16.msra.mxu0 0
    %508 = vmatprep.subr.bf16.mxu0 0
    %509 = vmatpush1.bf16.msra.mxu0 0
    %510 = vmatprep.subr.bf16.mxu0 0
    %511 = vmatpush1.bf16.msra.mxu0 0
    %512 = vmatprep.subr.bf16.mxu0 0
    %513 = vmatpush1.bf16.msra.mxu0 0
    %514 = vmatprep.subr.bf16.mxu0 0
    %515 = vmatpush1.bf16.msra.mxu0 0
    %516 = vmatprep.subr.bf16.mxu0 0
    %517 = vmatpush1.bf16.msra.mxu0 0
    %518 = vmatprep.mubr.bf16.mxu0 0
    %519 = vmatmul.mubr.bf16.gmra.mrb[0].mxu0 %v484
    %v520 = vpop.f32.mrb[0].mxu0
    %v521 = vadd.f32 0.0, %v520
    %v522 = vpop.f32.mrb[0].mxu0
    %v523 = vpop.f32.mrb[0].mxu0
    %v524 = vpop.f32.mrb[0].mxu0
    %525 = vdwg.mxu0
    %v526 = vadd.f32 %v163, %v521
    %v527 = vtanh.pop %v526
    %v528 = vmul.f32 %v527, %v175
    %v529 = vadd.f32 %v528, %v176
    %v531 = vrot.slane %v471, 6
    %v533 = vmul.f32 %v529, %v531
    %535 = vrot.lane.b32.xlu0 %v529, 64
    %v536 = vpop.permute.xlu0 %535
    %v538 = vmul.f32 %v529, %v536
    %540 = vrot.lane.b32.xlu0 %v538, 32
    %v541 = vpop.permute.xlu0 %540
    %v543 = vadd.f32 %v533, %v541
    %v544 = vtanh.pop %v543
    %546 = vrot.lane.b32.xlu0 %v544, 64
    %v547 = vpop.permute.xlu0 %546
    %v549 = vmul.f32 %v529, %v547
    %v550 = vpack.c.bf16 %v549, %v549
    %552 = vrot.lane.b32.xlu0 %v550, 32
    %v553 = vpop.permute.xlu0 %552
    %v555 = vsel %vm189, %v553, 0
    %557 = vmatprep.subr.bf16.mxu0 0
    %558 = vmatpush1.bf16.msra.mxu0 %v185
    %559 = vmatprep.subr.bf16.mxu0 0
    %560 = vmatpush1.bf16.msra.mxu0 %v186
    %561 = vmatprep.subr.bf16.mxu0 0
    %562 = vmatpush1.bf16.msra.mxu0 0
    %563 = vmatprep.subr.bf16.mxu0 0
    %564 = vmatpush1.bf16.msra.mxu0 0
    %565 = vmatprep.subr.bf16.mxu0 0
    %566 = vmatpush1.bf16.msra.mxu0 0
    %567 = vmatprep.subr.bf16.mxu0 0
    %568 = vmatpush1.bf16.msra.mxu0 0
    %569 = vmatprep.subr.bf16.mxu0 0
    %570 = vmatpush1.bf16.msra.mxu0 0
    %571 = vmatprep.subr.bf16.mxu0 0
    %572 = vmatpush1.bf16.msra.mxu0 0
    %573 = vmatprep.subr.bf16.mxu0 0
    %574 = vmatpush1.bf16.msra.mxu0 0
    %575 = vmatprep.subr.bf16.mxu0 0
    %576 = vmatpush1.bf16.msra.mxu0 0
    %577 = vmatprep.subr.bf16.mxu0 0
    %578 = vmatpush1.bf16.msra.mxu0 0
    %579 = vmatprep.subr.bf16.mxu0 0
    %580 = vmatpush1.bf16.msra.mxu0 0
    %581 = vmatprep.subr.bf16.mxu0 0
    %582 = vmatpush1.bf16.msra.mxu0 0
    %583 = vmatprep.subr.bf16.mxu0 0
    %584 = vmatpush1.bf16.msra.mxu0 0
    %585 = vmatprep.subr.bf16.mxu0 0
    %586 = vmatpush1.bf16.msra.mxu0 0
    %587 = vmatprep.subr.bf16.mxu0 0
    %588 = vmatpush1.bf16.msra.mxu0 0
    %589 = vmatprep.mubr.bf16.mxu0 0
    %590 = vmatmul.mubr.bf16.gmra.mrb[0].mxu0 %v555
    %v591 = vpop.f32.mrb[0].mxu0
    %v592 = vadd.f32 0.0, %v591
    %v593 = vpop.f32.mrb[0].mxu0
    %v594 = vpop.f32.mrb[0].mxu0
    %v595 = vpop.f32.mrb[0].mxu0
    %596 = vdwg.mxu0
    %v598 = vrot.slane %v592, 6
    %v600 = vadd.f32 %v163, %v598
    %v601 = vtanh.pop %v600
    %v602 = vmul.f32 %v601, %v175
    %v603 = vadd.f32 %v602, %v176
    %v605 = vrot.slane %v543, 6
    %v607 = vmul.f32 %v603, %v605
    %609 = vrot.lane.b32.xlu0 %v603, 64
    %v610 = vpop.permute.xlu0 %609
    %v612 = vmul.f32 %v603, %v610
    %614 = vrot.lane.b32.xlu0 %v612, 32
    %v615 = vpop.permute.xlu0 %614
    %v617 = vadd.f32 %v607, %v615
    %v618 = vtanh.pop %v617
    %620 = vrot.lane.b32.xlu0 %v618, 64
    %v621 = vpop.permute.xlu0 %620
    %v623 = vmul.f32 %v603, %v621
    %v624 = vpack.c.bf16 %v623, %v623
    %v626 = vrot.slane %v624, 1
    %627 = vrot.lane.b32.xlu0 %v626, 32
    %v628 = vpop.permute.xlu0 %627
    %v630 = vsel %vm189, %v628, 0
    %632 = vmatprep.subr.bf16.mxu0 0
    %633 = vmatpush1.bf16.msra.mxu0 %v185
    %634 = vmatprep.subr.bf16.mxu0 0
    %635 = vmatpush1.bf16.msra.mxu0 %v186
    %636 = vmatprep.subr.bf16.mxu0 0
    %637 = vmatpush1.bf16.msra.mxu0 0
    %638 = vmatprep.subr.bf16.mxu0 0
    %639 = vmatpush1.bf16.msra.mxu0 0
    %640 = vmatprep.subr.bf16.mxu0 0
    %641 = vmatpush1.bf16.msra.mxu0 0
    %642 = vmatprep.subr.bf16.mxu0 0
    %643 = vmatpush1.bf16.msra.mxu0 0
    %644 = vmatprep.subr.bf16.mxu0 0
    %645 = vmatpush1.bf16.msra.mxu0 0
    %646 = vmatprep.subr.bf16.mxu0 0
    %647 = vmatpush1.bf16.msra.mxu0 0
    %648 = vmatprep.subr.bf16.mxu0 0
    %649 = vmatpush1.bf16.msra.mxu0 0
    %650 = vmatprep.subr.bf16.mxu0 0
    %651 = vmatpush1.bf16.msra.mxu0 0
    %652 = vmatprep.subr.bf16.mxu0 0
    %653 = vmatpush1.bf16.msra.mxu0 0
    %654 = vmatprep.subr.bf16.mxu0 0
    %655 = vmatpush1.bf16.msra.mxu0 0
    %656 = vmatprep.subr.bf16.mxu0 0
    %657 = vmatpush1.bf16.msra.mxu0 0
    %658 = vmatprep.subr.bf16.mxu0 0
    %659 = vmatpush1.bf16.msra.mxu0 0
    %660 = vmatprep.subr.bf16.mxu0 0
    %661 = vmatpush1.bf16.msra.mxu0 0
    %662 = vmatprep.subr.bf16.mxu0 0
    %663 = vmatpush1.bf16.msra.mxu0 0
    %664 = vmatprep.mubr.bf16.mxu0 0
    %665 = vmatmul.mubr.bf16.gmra.mrb[0].mxu0 %v630
    %v666 = vpop.f32.mrb[0].mxu0
    %v667 = vadd.f32 0.0, %v666
    %v668 = vpop.f32.mrb[0].mxu0
    %v669 = vpop.f32.mrb[0].mxu0
    %v670 = vpop.f32.mrb[0].mxu0
    %671 = vdwg.mxu0
    %v673 = vrot.slane %v667, 4
    %v675 = vadd.f32 %v163, %v673
    %v676 = vtanh.pop %v675
    %v677 = vmul.f32 %v676, %v175
    %v678 = vadd.f32 %v677, %v176
    %v680 = vrot.slane %v617, 6
    %v682 = vmul.f32 %v678, %v680
    %684 = vrot.lane.b32.xlu0 %v678, 64
    %v685 = vpop.permute.xlu0 %684
    %v687 = vmul.f32 %v678, %v685
    %689 = vrot.lane.b32.xlu0 %v687, 32
    %v690 = vpop.permute.xlu0 %689
    %v692 = vadd.f32 %v682, %v690
    %v693 = vtanh.pop %v692
    %695 = vrot.lane.b32.xlu0 %v693, 64
    %v696 = vpop.permute.xlu0 %695
    %v698 = vmul.f32 %v678, %v696
    %v699 = vpack.c.bf16 %v698, %v698
    %v701 = vrot.slane %v699, 2
    %702 = vrot.lane.b32.xlu0 %v701, 32
    %v703 = vpop.permute.xlu0 %702
    %v705 = vsel %vm189, %v703, 0
    %707 = vmatprep.subr.bf16.mxu0 0
    %708 = vmatpush1.bf16.msra.mxu0 %v185
    %709 = vmatprep.subr.bf16.mxu0 0
    %710 = vmatpush1.bf16.msra.mxu0 %v186
    %711 = vmatprep.subr.bf16.mxu0 0
    %712 = vmatpush1.bf16.msra.mxu0 0
    %713 = vmatprep.subr.bf16.mxu0 0
    %714 = vmatpush1.bf16.msra.mxu0 0
    %715 = vmatprep.subr.bf16.mxu0 0
    %716 = vmatpush1.bf16.msra.mxu0 0
    %717 = vmatprep.subr.bf16.mxu0 0
    %718 = vmatpush1.bf16.msra.mxu0 0
    %719 = vmatprep.subr.bf16.mxu0 0
    %720 = vmatpush1.bf16.msra.mxu0 0
    %721 = vmatprep.subr.bf16.mxu0 0
    %722 = vmatpush1.bf16.msra.mxu0 0
    %723 = vmatprep.subr.bf16.mxu0 0
    %724 = vmatpush1.bf16.msra.mxu0 0
    %725 = vmatprep.subr.bf16.mxu0 0
    %726 = vmatpush1.bf16.msra.mxu0 0
    %727 = vmatprep.subr.bf16.mxu0 0
    %728 = vmatpush1.bf16.msra.mxu0 0
    %729 = vmatprep.subr.bf16.mxu0 0
    %730 = vmatpush1.bf16.msra.mxu0 0
    %731 = vmatprep.subr.bf16.mxu0 0
    %732 = vmatpush1.bf16.msra.mxu0 0
    %733 = vmatprep.subr.bf16.mxu0 0
    %734 = vmatpush1.bf16.msra.mxu0 0
    %735 = vmatprep.subr.bf16.mxu0 0
    %736 = vmatpush1.bf16.msra.mxu0 0
    %737 = vmatprep.subr.bf16.mxu0 0
    %738 = vmatpush1.bf16.msra.mxu0 0
    %739 = vmatprep.mubr.bf16.mxu0 0
    %740 = vmatmul.mubr.bf16.gmra.mrb[0].mxu0 %v705
    %v741 = vpop.f32.mrb[0].mxu0
    %v742 = vadd.f32 0.0, %v741
    %v743 = vpop.f32.mrb[0].mxu0
    %v744 = vpop.f32.mrb[0].mxu0
    %v745 = vpop.f32.mrb[0].mxu0
    %746 = vdwg.mxu0
    %v748 = vrot.slane %v742, 2
    %v750 = vadd.f32 %v163, %v748
    %v751 = vtanh.pop %v750
    %v752 = vmul.f32 %v751, %v175
    %v753 = vadd.f32 %v752, %v176
    %v755 = vrot.slane %v692, 6
    %v757 = vmul.f32 %v753, %v755
    %759 = vrot.lane.b32.xlu0 %v753, 64
    %v760 = vpop.permute.xlu0 %759
    %v762 = vmul.f32 %v753, %v760
    %764 = vrot.lane.b32.xlu0 %v762, 32
    %v765 = vpop.permute.xlu0 %764
    %v767 = vadd.f32 %v757, %v765
    %v768 = vtanh.pop %v767
    %770 = vrot.lane.b32.xlu0 %v768, 64
    %v771 = vpop.permute.xlu0 %770
    %v773 = vmul.f32 %v753, %v771
    %v774 = vpack.c.bf16 %v773, %v773
    %v775 = vld [vmem:[#allocation8] sm:$0xf]
    %v776 = vld [vmem:[#allocation8 + $0x4] sm:$0xf]
    %v777 = vld [vmem:[#allocation8 + $0x8] sm:$0xf]
    %v778 = vld [vmem:[#allocation8 + $0xc] sm:$0xf]
    %v779 = vld [vmem:[%s7] sm:$0x1]
    %v780 = vlaneseq
    %v781 = vshrl.u32 %v780, 7
    %v782 = vsub.s32 0, %v781
    %v783 = vrot.slane %v779, %v782
    %v785 = vrot.slane %v774, 3
    %786 = vrot.lane.b32.xlu0 %v785, 32
    %v787 = vpop.permute.xlu0 %786
    %v792 = vunpack.c.l.b16 %v775
    %v793 = vunpack.c.l.b16 %v776
    %v794 = vunpack.c.l.b16 %v777
    %v795 = vunpack.c.l.b16 %v778
    %v796 = vpack.c.b16 %v793, %v792
    %v797 = vpack.c.b16 %v795, %v794
    %v801 = vsel %vm189, %v787, 0
    %803 = vmatprep.subr.bf16.mxu0 0
    %804 = vmatpush1.bf16.msra.mxu0 %v796
    %805 = vmatprep.subr.bf16.mxu0 0
    %806 = vmatpush1.bf16.msra.mxu0 %v797
    %807 = vmatprep.subr.bf16.mxu0 0
    %808 = vmatpush1.bf16.msra.mxu0 0
    %809 = vmatprep.subr.bf16.mxu0 0
    %810 = vmatpush1.bf16.msra.mxu0 0
    %811 = vmatprep.subr.bf16.mxu0 0
    %812 = vmatpush1.bf16.msra.mxu0 0
    %813 = vmatprep.subr.bf16.mxu0 0
    %814 = vmatpush1.bf16.msra.mxu0 0
    %815 = vmatprep.subr.bf16.mxu0 0
    %816 = vmatpush1.bf16.msra.mxu0 0
    %817 = vmatprep.subr.bf16.mxu0 0
    %818 = vmatpush1.bf16.msra.mxu0 0
    %819 = vmatprep.subr.bf16.mxu0 0
    %820 = vmatpush1.bf16.msra.mxu0 0
    %821 = vmatprep.subr.bf16.mxu0 0
    %822 = vmatpush1.bf16.msra.mxu0 0
    %823 = vmatprep.subr.bf16.mxu0 0
    %824 = vmatpush1.bf16.msra.mxu0 0
    %825 = vmatprep.subr.bf16.mxu0 0
    %826 = vmatpush1.bf16.msra.mxu0 0
    %827 = vmatprep.subr.bf16.mxu0 0
    %828 = vmatpush1.bf16.msra.mxu0 0
    %829 = vmatprep.subr.bf16.mxu0 0
    %830 = vmatpush1.bf16.msra.mxu0 0
    %831 = vmatprep.subr.bf16.mxu0 0
    %832 = vmatpush1.bf16.msra.mxu0 0
    %833 = vmatprep.subr.bf16.mxu0 0
    %834 = vmatpush1.bf16.msra.mxu0 0
    %835 = vmatprep.mubr.bf16.mxu0 0
    %836 = vmatmul.mubr.bf16.gmra.mrb[0].mxu0 %v801
    %v837 = vpop.f32.mrb[0].mxu0
    %v838 = vadd.f32 %v783, %v837
    %v839 = vpop.f32.mrb[0].mxu0
    %v840 = vpop.f32.mrb[0].mxu0
    %v841 = vpop.f32.mrb[0].mxu0
    %842 = vdwg.mxu0
    %v843 = vmax.f32 %v838, 0.0
    %v844 = vpack.c.bf16 %v843, %v843
    %v845 = vld [vmem:[#allocation10] sm:$0xf]
    %v846 = vld [vmem:[#allocation10 + $0x4] sm:$0xf]
    %v847 = vld [vmem:[#allocation10 + $0x8] sm:$0xf]
    %v848 = vld [vmem:[#allocation10 + $0xc] sm:$0xf]
    %v849 = vld [vmem:[#allocation10 + $0x10] sm:$0xf]
    %v850 = vld [vmem:[#allocation10 + $0x14] sm:$0xf]
    %v851 = vld [vmem:[#allocation10 + $0x18] sm:$0xf]
    %v852 = vld [vmem:[#allocation10 + $0x1c] sm:$0xf]
    %v853 = vld [vmem:[#allocation10 + $0x20] sm:$0xf]
    %v854 = vld [vmem:[#allocation10 + $0x24] sm:$0xf]
    %v855 = vld [vmem:[#allocation10 + $0x28] sm:$0xf]
    %v856 = vld [vmem:[#allocation10 + $0x2c] sm:$0xf]
    %v857 = vld [vmem:[#allocation10 + $0x30] sm:$0xf]
    %v858 = vld [vmem:[#allocation10 + $0x34] sm:$0xf]
    %v859 = vld [vmem:[#allocation10 + $0x38] sm:$0xf]
    %v860 = vld [vmem:[#allocation10 + $0x3c] sm:$0xf]
    %v861 = vld [vmem:[%s7 + $0x1] sm:$0x1]
    %v862 = vlaneseq
    %v863 = vshrl.u32 %v862, 7
    %v864 = vsub.s32 0, %v863
    %v865 = vrot.slane %v861, %v864
    %v882 = vunpack.c.l.b16 %v845
    %v883 = vunpack.c.l.b16 %v846
    %v884 = vunpack.c.l.b16 %v847
    %v885 = vunpack.c.l.b16 %v848
    %v886 = vunpack.c.l.b16 %v849
    %v887 = vunpack.c.l.b16 %v850
    %v888 = vunpack.c.l.b16 %v851
    %v889 = vunpack.c.l.b16 %v852
    %v890 = vunpack.c.l.b16 %v853
    %v891 = vunpack.c.l.b16 %v854
    %v892 = vunpack.c.l.b16 %v855
    %v893 = vunpack.c.l.b16 %v856
    %v894 = vunpack.c.l.b16 %v857
    %v895 = vunpack.c.l.b16 %v858
    %v896 = vunpack.c.l.b16 %v859
    %v897 = vunpack.c.l.b16 %v860
    %v898 = vpack.c.b16 %v883, %v882
    %v899 = vpack.c.b16 %v885, %v884
    %v900 = vpack.c.b16 %v887, %v886
    %v901 = vpack.c.b16 %v889, %v888
    %v902 = vpack.c.b16 %v891, %v890
    %v903 = vpack.c.b16 %v893, %v892
    %v904 = vpack.c.b16 %v895, %v894
    %v905 = vpack.c.b16 %v897, %v896
    %914 = vmatprep.subr.bf16.mxu0 0
    %915 = vmatpush1.bf16.msra.mxu0 %v898
    %916 = vmatprep.subr.bf16.mxu0 0
    %917 = vmatpush1.bf16.msra.mxu0 %v899
    %918 = vmatprep.subr.bf16.mxu0 0
    %919 = vmatpush1.bf16.msra.mxu0 %v900
    %920 = vmatprep.subr.bf16.mxu0 0
    %921 = vmatpush1.bf16.msra.mxu0 %v901
    %922 = vmatprep.subr.bf16.mxu0 0
    %923 = vmatpush1.bf16.msra.mxu0 %v902
    %924 = vmatprep.subr.bf16.mxu0 0
    %925 = vmatpush1.bf16.msra.mxu0 %v903
    %926 = vmatprep.subr.bf16.mxu0 0
    %927 = vmatpush1.bf16.msra.mxu0 %v904
    %928 = vmatprep.subr.bf16.mxu0 0
    %929 = vmatpush1.bf16.msra.mxu0 %v905
    %930 = vmatprep.subr.bf16.mxu0 0
    %931 = vmatpush1.bf16.msra.mxu0 0
    %932 = vmatprep.subr.bf16.mxu0 0
    %933 = vmatpush1.bf16.msra.mxu0 0
    %934 = vmatprep.subr.bf16.mxu0 0
    %935 = vmatpush1.bf16.msra.mxu0 0
    %936 = vmatprep.subr.bf16.mxu0 0
    %937 = vmatpush1.bf16.msra.mxu0 0
    %938 = vmatprep.subr.bf16.mxu0 0
    %939 = vmatpush1.bf16.msra.mxu0 0
    %940 = vmatprep.subr.bf16.mxu0 0
    %941 = vmatpush1.bf16.msra.mxu0 0
    %942 = vmatprep.subr.bf16.mxu0 0
    %943 = vmatpush1.bf16.msra.mxu0 0
    %944 = vmatprep.subr.bf16.mxu0 0
    %945 = vmatpush1.bf16.msra.mxu0 0
    %946 = vmatprep.mubr.bf16.mxu0 0
    %947 = vmatmul.mubr.bf16.gmra.mrb[0].mxu0 %v844
    %v948 = vpop.f32.mrb[0].mxu0
    %v949 = vadd.f32 %v865, %v948
    %v950 = vpop.f32.mrb[0].mxu0
    %v951 = vpop.f32.mrb[0].mxu0
    %v952 = vpop.f32.mrb[0].mxu0
    %953 = vdwg.mxu0
    %v954 = vmax.f32 %v949, 0.0
    %v955 = vld [vmem:[%s6] sm:$0x1]
    %v957 = vlaneseq
    %v958 = vshrl.u32 %v957, 7
    %v959 = vsub.s32 0, %v958
    %v960 = vrot.slane %v955, %v959
    %v962 = vmul.f32 %v954, %v960
    %vm963 = vcmask 1041408
    %v964 = vsel %vm963, %v962, 0.0
    %965 = vadd.xlane.f32.xlu0 %v964
    %v966 = vpop.xlane.xlu0 %965
    %v967 = vld [vmem:[%s7 + $0x2] sm:$0x1]
    %v968 = vlaneseq
    %v969 = vshrl.u32 %v968, 7
    %v970 = vsub.s32 0, %v969
    %v971 = vrot.slane %v967, %v970
    %v972 = vadd.f32 %v966, %v971
    %973 = vst [vmem:[#allocation11] sm:$0x3] %v972
    // Predicated region
    $region54: #{tpu_custom_call.1} parent=1 // pred_check
      _
    $region55: #{tpu_custom_call.1} parent=1 // pred_check_branch
      %975 = sbr.rel (0) target = $region57
    $region56: #{tpu_custom_call.1} parent=1 // pred_region
      %s977 = ssub.s32 32, 32
      %978 = vsyncadd [#allocation4], %s977
      %s980 = sshll.u32 [#allocation11], 4
      %s981 = int_to_ptr.vmem [resolvable:$true] %s980
      %983 = dma.vmem_to_hbm [thread:$0]  %s981, 32, %s8, [#allocation4]
    $region57: #{tpu_custom_call.1} parent=1 // pred_fallthru
      _
    // Predicated region
    $region58: #{tpu_custom_call.1} parent=1 // pred_check
      _
    $region59: #{tpu_custom_call.1} parent=1 // pred_check_branch
      %985 = sbr.rel (0) target = $region61
    $region60: #{tpu_custom_call.1} parent=1 // pred_region
      %986 = dma.done [#allocation4], 32
    $region61: #{tpu_custom_call.1} parent=1 // pred_fallthru
      _
    %987 = vsyncpa [#allocation3], 1
    %988 = vsyncpa [#allocation6], 1
    %989 = vsyncpa [#allocation9], 1
    %990 = vsyncpa [#allocation4], 1

</llo_original>
